<compile_context>
chip_gen: v7x
topology: tpu7x:2x2x1
jax: 0.10.0
libtpu: 0.0.40
codegen_flags: <defaults>
</compile_context>

<pallas_src>
import functools

import jax
import jax.numpy as jnp
from jax.experimental import pallas as pl
from jax.experimental.pallas import tpu as pltpu


def _round_up(v, m):
    return -(-v // m) * m


def _round_down(v, m):
    return (v // m) * m


# ----------------------------------------------------------------------------
# Fused kernel: one matmul over the concatenated head weights, one pass over x.
#   x_ref   : (1, Cin, T)          spatial tile of one batch element
#   w_ref   : (Co_tot_pad, Cin)    [w_ins; pad; w_seg; pad; wc; pad]
#   b_ref   : (Co_tot_pad, 1)      [b_ins; pad; b_seg; pad; 0 ...]
#   ins_ref : (1, Co_ins, T)       ins_head output tile (lane-dense stores)
#   seg_ref : (1, Co_seg, T)       seg_head output tile (lane-dense stores)
#   cnt_ref : (1, 1, 1, 1)         per-(n, tile) partial counter logit
# ----------------------------------------------------------------------------
def fehead_kernel(x_ref, w_ref, b_ref, ins_ref, seg_ref, cnt_ref, *,
                  co_ins, co_seg, ci_pad, cnt_row, hw, tile_hw, mask_tail):
    x = x_ref[0]  # (Cin, T)

    if mask_tail:
        # Last HW tile is partial: OOB columns of the VMEM buffer hold garbage.
        # Zero them so the counter sum is exact; garbage output columns would be
        # dropped on writeback anyway.
        j = pl.program_id(1)
        col = jax.lax.broadcasted_iota(jnp.int32, x.shape, 1) + j * tile_hw
        x = jnp.where(col < hw, x, jnp.zeros_like(x))

    # Single fused MXU matmul (f32 accumulation).
    # TODO(synk): pass precision=jax.lax.Precision.HIGHEST for bit-tighter
    # parity with a true f32 conv; default precision keeps errors ~1e-3.
    y = jnp.dot(w_ref[...], x, preferred_element_type=jnp.float32)
    y = y + b_ref[...]

    ins_ref[0] = y[:co_ins].astype(ins_ref.dtype)
    seg_ref[0] = y[ci_pad:ci_pad + co_seg].astype(seg_ref.dtype)

    # Folded counter branch: wc @ x summed over this tile's columns -> scalar.
    cnt_ref[...] = jnp.sum(y[cnt_row:cnt_row + 1, :], axis=1,
                           keepdims=True).reshape(cnt_ref.shape)


def fehead_pallas(x3, w_cat, b_cat, *, tile_hw, grid_hw, hw, mask_tail,
                  co_ins, co_seg, ci_pad, cnt_row, out_dtype):
    """x3: (N, Cin, HW); outputs keep the exact HW extent (no padding)."""
    N, Cin, HW = x3.shape
    co_tot = w_cat.shape[0]

    kernel = functools.partial(
        fehead_kernel, co_ins=co_ins, co_seg=co_seg, ci_pad=ci_pad,
        cnt_row=cnt_row, hw=hw, tile_hw=tile_hw, mask_tail=mask_tail)

    out_shape = (
        jax.ShapeDtypeStruct((N, co_ins, HW), out_dtype),        # ins_head
        jax.ShapeDtypeStruct((N, co_seg, HW), out_dtype),        # seg_head
        jax.ShapeDtypeStruct((N, grid_hw, 1, 1), jnp.float32),   # counter partials
    )

    # Actual double-buffered footprint (x tile + both dense output tiles +
    # weights) plus 1 MiB slack; never request more than 32 MiB (v7x physical
    # VMEM is only 64 MiB per TensorCore).
    vmem_need = (2 * 4 * tile_hw * (Cin + co_ins + co_seg)
                 + 2 * 4 * (co_tot * Cin + co_tot) + (1 << 20))
    vmem_limit = int(min(max(vmem_need, 16 * 1024 * 1024), 32 * 1024 * 1024))

    return pl.pallas_call(
        kernel,
        out_shape=out_shape,
        grid_spec=pltpu.PrefetchScalarGridSpec(
            num_scalar_prefetch=0,
            grid=(N, grid_hw),
            in_specs=[
                pl.BlockSpec((1, Cin, tile_hw), lambda n, j: (n, 0, j)),
                pl.BlockSpec((co_tot, Cin), lambda n, j: (0, 0)),
                pl.BlockSpec((co_tot, 1), lambda n, j: (0, 0)),
            ],
            out_specs=[
                pl.BlockSpec((1, co_ins, tile_hw), lambda n, j: (n, 0, j)),
                pl.BlockSpec((1, co_seg, tile_hw), lambda n, j: (n, 0, j)),
                pl.BlockSpec((1, 1, 1, 1), lambda n, j: (n, j, 0, 0)),
            ],
        ),
        compiler_params=pltpu.CompilerParams(
            dimension_semantics=("parallel", "parallel"),
            vmem_limit_bytes=vmem_limit,
        ),
    )(x3, w_cat, b_cat)


# ----------------------------------------------------------------------------
# Tile selection: large lane tiles bounded by a VMEM budget; ensure >=2 grid
# steps for v7x megacore when the input allows it.
# ----------------------------------------------------------------------------
def _choose_tile(hw, n, cin, co_out, cap):
    per_col_bytes = 2 * 4 * (cin + co_out)                 # double-buffered, f32
    budget = 24 * 1024 * 1024
    t_budget = max(128, _round_down(budget // per_col_bytes, 128))
    cap = max(128, _round_down(int(cap), 128))
    t_max = min(cap, t_budget)

    tile = hw if hw <= t_max else t_max                    # full-row block if it fits
    grid_hw = -(-hw // tile)

    if n * grid_hw < 2 and hw >= 256:                      # keep both v7x TCs busy
        tile = max(128, _round_up(-(-hw // 2), 128))
        grid_hw = -(-hw // tile)

    mask_tail = (grid_hw * tile != hw)
    return tile, grid_hw, mask_tail


# ----------------------------------------------------------------------------
# Weight prep: concatenate heads + folded counter row, 8-sublane aligned groups.
# ----------------------------------------------------------------------------
def _prep_weights(params, hw):
    cin = params["ins_w"].shape[1]
    co_ins = params["ins_w"].shape[0]
    co_seg = params["seg_w"].shape[0]
    ci_pad = _round_up(co_ins, 8)
    cs_pad = _round_up(co_seg, 8)
    cnt_row = ci_pad + cs_pad
    co_tot = _round_up(cnt_row + 1, 8)

    # count = sigmoid(lin_w @ (cnt_w @ mean_hw(x) + cnt_b) + lin_b)
    #       = sigmoid(sum_hw(wc @ x) + bc), wc = lin_w@cnt_w/HW (exact fold).
    wc = (params["lin_w"] @ params["cnt_w"]) / float(hw)          # (1, Cin)
    bc = params["lin_w"] @ params["cnt_b"] + params["lin_b"]      # (1,)

    w_cat = jnp.zeros((co_tot, cin), jnp.float32)
    w_cat = w_cat.at[:co_ins].set(params["ins_w"])
    w_cat = w_cat.at[ci_pad:ci_pad + co_seg].set(params["seg_w"])
    w_cat = w_cat.at[cnt_row].set(wc[0])

    b_cat = jnp.zeros((co_tot, 1), jnp.float32)
    b_cat = b_cat.at[:co_ins, 0].set(params["ins_b"])
    b_cat = b_cat.at[ci_pad:ci_pad + co_seg, 0].set(params["seg_b"])

    meta = dict(co_ins=co_ins, co_seg=co_seg, ci_pad=ci_pad, cnt_row=cnt_row)
    return w_cat, b_cat, bc, meta


# ----------------------------------------------------------------------------
# Parameters (shapes match the PyTorch module)
# ----------------------------------------------------------------------------
def init_fehead_params(key, in_chs, out_chs):
    ks = jax.random.split(key, 8)
    scale = 0.1

    def init(k, shape):
        return scale * jax.random.normal(k, shape, dtype=jnp.float32)

    return {
        "ins_w": init(ks[0], (out_chs, in_chs)),   # Conv2d(in_chs, out_chs, 1)
        "ins_b": init(ks[1], (out_chs,)),
        "seg_w": init(ks[2], (2, in_chs)),         # Conv2d(in_chs, 2, 1)
        "seg_b": init(ks[3], (2,)),
        "cnt_w": init(ks[4], (out_chs, in_chs)),   # InstanceCounter.cnn conv
        "cnt_b": init(ks[5], (out_chs,)),
        "lin_w": init(ks[6], (1, out_chs)),        # Linear(out_chs, 1)
        "lin_b": init(ks[7], (1,)),
    }


# ----------------------------------------------------------------------------
# feHead forward wrapper
# ----------------------------------------------------------------------------
@functools.partial(jax.jit, static_argnames=("tile_hw_cap", "out_dtype"))
def fehead_forward(x_nchw, params, *, tile_hw_cap=16384, out_dtype=jnp.float32):
    N, Cin, H, W = x_nchw.shape
    HW = H * W
    co_ins = params["ins_w"].shape[0]
    co_seg = params["seg_w"].shape[0]

    tile_hw, grid_hw, mask_tail = _choose_tile(HW, N, Cin, co_ins + co_seg,
                                               tile_hw_cap)

    x3 = x_nchw.reshape(N, Cin, HW)          # free reshape; HW on the lane axis
    w_cat, b_cat, bc, meta = _prep_weights(params, HW)
    w_cat = w_cat.astype(x3.dtype)

    ins3, seg3, cnt_part = fehead_pallas(
        x3, w_cat, b_cat, tile_hw=tile_hw, grid_hw=grid_hw, hw=HW,
        mask_tail=mask_tail, out_dtype=out_dtype, **meta)

    ins_head = ins3.reshape(N, co_ins, H, W)
    seg_head = seg3.reshape(N, co_seg, H, W)

    logits = jnp.sum(cnt_part, axis=(1, 2, 3))[:, None] + bc[None, :]   # (N, 1)
    count = jax.nn.sigmoid(logits)
    return seg_head, ins_head, count


# ----------------------------------------------------------------------------
# Pure-JAX reference (unfused, matches PyTorch op-for-op)
# ----------------------------------------------------------------------------
def fehead_reference(x_nchw, params):
    def conv1x1(x, w, b):
        return jnp.einsum("nchw,oc->nohw", x, w) + b[None, :, None, None]

    ins = conv1x1(x_nchw, params["ins_w"], params["ins_b"])
    seg = conv1x1(x_nchw, params["seg_w"], params["seg_b"])
    cnt = conv1x1(x_nchw, params["cnt_w"], params["cnt_b"])
    pooled = jnp.mean(cnt, axis=(2, 3))                        # (N, out_chs)
    logits = pooled @ params["lin_w"].T + params["lin_b"]      # (N, 1)
    count = jax.nn.sigmoid(logits)
    return seg, ins, count


def _check(out, ref, n, co_ins, h, w):
    seg_head, ins_head, count = out
    seg_ref, ins_ref, cnt_ref = ref
    assert seg_head.shape == (n, 2, h, w)
    assert ins_head.shape == (n, co_ins, h, w)
    assert count.shape == (n, 1)
    assert jnp.allclose(seg_head, seg_ref, atol=2e-3, rtol=2e-3)
    assert jnp.allclose(ins_head, ins_ref, atol=2e-3, rtol=2e-3)
    assert jnp.allclose(count, cnt_ref, atol=2e-3, rtol=2e-3)


if __name__ == "__main__":
    key = jax.random.PRNGKey(0)
    k_x, k_p, k_x2 = jax.random.split(key, 3)

    N, in_chs, out_chs, H, W = 2, 8, 4, 16, 16
    x = jax.random.normal(k_x, (N, in_chs, H, W), dtype=jnp.float32)
    params = init_fehead_params(k_p, in_chs, out_chs)
    ref = fehead_reference(x, params)

    # 1) Default large tile (single HW step per n) and 2) forced 128-wide tile
    #    (multi-step grid, HW divisible) exercise both paths.
    for cap in (16384, 128):
        out = fehead_forward(x, params, tile_hw_cap=cap)
        jax.block_until_ready(out)
        _check(out, ref, N, out_chs, H, W)

    # 3) Ragged spatial size with a partial last tile (HW=180, tile=128):
    #    exercises the in-kernel tail mask — no pad/slice copies anywhere.
    H2, W2 = 9, 20
    x2 = jax.random.normal(k_x2, (N, in_chs, H2, W2), dtype=jnp.float32)
    ref2 = fehead_reference(x2, params)
    out2 = fehead_forward(x2, params, tile_hw_cap=128)
    jax.block_until_ready(out2)
    _check(out2, ref2, N, out_chs, H2, W2)

    # 4) N == 1: the tile chooser splits HW so the grid has >= 2 steps (v7x).
    x1 = x[:1]
    ref1 = fehead_reference(x1, params)
    out1 = fehead_forward(x1, params)
    jax.block_until_ready(out1)
    _check(out1, ref1, 1, out_chs, H, W)

    print("KERNEL_OK")
</pallas_src>

<mosaic_0001>
module attributes {stable_mosaic.version = 11 : i64} {
  func.func @fehead_kernel(%arg0: i32, %arg1: i32, %arg2: memref<1x8x256xf32, #tpu.memory_space<vmem>>, %arg3: memref<24x8xf32, #tpu.memory_space<vmem>>, %arg4: memref<24x1xf32, #tpu.memory_space<vmem>>, %arg5: memref<1x4x256xf32, #tpu.memory_space<vmem>>, %arg6: memref<1x2x256xf32, #tpu.memory_space<vmem>>, %arg7: memref<1x1x1x1xf32, #tpu.memory_space<vmem>>) attributes {dimension_semantics = [#tpu.dimension_semantics<parallel>, #tpu.dimension_semantics<parallel>], iteration_bounds = array<i64: 2, 1>, scalar_prefetch = 0 : i64, scratch_operands = 0 : i64, tpu.core_type = #tpu.core_type<tc>, window_params = [{transform_indices = @transform_0, window_bounds = array<i64: 1, 8, 256>}, {pipeline_mode = #tpu.pipeline_mode<synchronous>, transform_indices = @transform_1, window_bounds = array<i64: 24, 8>}, {pipeline_mode = #tpu.pipeline_mode<synchronous>, transform_indices = @transform_2, window_bounds = array<i64: 24, 1>}, {transform_indices = @transform_3, window_bounds = array<i64: 1, 4, 256>}, {transform_indices = @transform_4, window_bounds = array<i64: 1, 2, 256>}, {transform_indices = @transform_5, window_bounds = array<i64: 1, 1, 1, 1>}]} {
    %c0 = arith.constant 0 : index
    %c0_0 = arith.constant 0 : index
    %c0_1 = arith.constant 0 : index
    %0 = vector.load %arg2[%c0, %c0_0, %c0_1] : memref<1x8x256xf32, #tpu.memory_space<vmem>>, vector<1x8x256xf32>
    %1 = vector.shape_cast %0 : vector<1x8x256xf32> to vector<8x256xf32>
    %c0_2 = arith.constant 0 : index
    %c0_3 = arith.constant 0 : index
    %2 = vector.load %arg3[%c0_2, %c0_3] : memref<24x8xf32, #tpu.memory_space<vmem>>, vector<24x8xf32>
    %cst = arith.constant dense<0.000000e+00> : vector<24x256xf32>
    %3 = tpu.matmul %2, %1, %cst {dimension_numbers = #tpu.dot_dimension_numbers<[1], [0], [0], [1], [0, 0, 1, 1], [], []>} : vector<24x8xf32>, vector<8x256xf32>, vector<24x256xf32> -> vector<24x256xf32>
    %c0_4 = arith.constant 0 : index
    %c0_5 = arith.constant 0 : index
    %4 = vector.load %arg4[%c0_4, %c0_5] : memref<24x1xf32, #tpu.memory_space<vmem>>, vector<24x1xf32>
    %5 = vector.broadcast %4 : vector<24x1xf32> to vector<24x256xf32>
    %6 = arith.addf %3, %5 : vector<24x256xf32>
    %7 = vector.extract_strided_slice %6 {offsets = [0, 0], sizes = [4, 256], strides = [1, 1]} : vector<24x256xf32> to vector<4x256xf32>
    %c0_6 = arith.constant 0 : index
    %c0_7 = arith.constant 0 : index
    %c0_8 = arith.constant 0 : index
    %8 = vector.load %arg5[%c0_6, %c0_7, %c0_8] : memref<1x4x256xf32, #tpu.memory_space<vmem>>, vector<1x4x256xf32>
    %9 = vector.shape_cast %8 : vector<1x4x256xf32> to vector<4x256xf32>
    %10 = vector.shape_cast %7 : vector<4x256xf32> to vector<1x4x256xf32>
    tpu.vector_store %arg5[%c0_6, %c0_7, %c0_8], %10 {strides = array<i32>} : memref<1x4x256xf32, #tpu.memory_space<vmem>>, vector<1x4x256xf32>,
    %11 = vector.extract_strided_slice %6 {offsets = [8, 0], sizes = [2, 256], strides = [1, 1]} : vector<24x256xf32> to vector<2x256xf32>
    %c0_9 = arith.constant 0 : index
    %c0_10 = arith.constant 0 : index
    %c0_11 = arith.constant 0 : index
    %12 = vector.load %arg6[%c0_9, %c0_10, %c0_11] : memref<1x2x256xf32, #tpu.memory_space<vmem>>, vector<1x2x256xf32>
    %13 = vector.shape_cast %12 : vector<1x2x256xf32> to vector<2x256xf32>
    %14 = vector.shape_cast %11 : vector<2x256xf32> to vector<1x2x256xf32>
    tpu.vector_store %arg6[%c0_9, %c0_10, %c0_11], %14 {strides = array<i32>} : memref<1x2x256xf32, #tpu.memory_space<vmem>>, vector<1x2x256xf32>,
    %15 = vector.extract_strided_slice %6 {offsets = [16, 0], sizes = [1, 256], strides = [1, 1]} : vector<24x256xf32> to vector<1x256xf32>
    %cst_12 = arith.constant dense<0.000000e+00> : vector<1xf32>
    %16 = vector.multi_reduction <add>, %15, %cst_12 [1] : vector<1x256xf32> to vector<1xf32>
    %17 = vector.shape_cast %16 : vector<1xf32> to vector<1x1xf32>
    %18 = vector.shape_cast %17 : vector<1x1xf32> to vector<1x1x1x1xf32>
    %c0_13 = arith.constant 0 : index
    %c0_14 = arith.constant 0 : index
    %c0_15 = arith.constant 0 : index
    %c0_16 = arith.constant 0 : index
    %19 = vector.load %arg7[%c0_13, %c0_14, %c0_15, %c0_16] : memref<1x1x1x1xf32, #tpu.memory_space<vmem>>, vector<1x1x1x1xf32>
    tpu.vector_store %arg7[%c0_13, %c0_14, %c0_15, %c0_16], %18 {strides = array<i32>} : memref<1x1x1x1xf32, #tpu.memory_space<vmem>>, vector<1x1x1x1xf32>,
    return
  }
  func.func @transform_0(%arg0: i32, %arg1: i32) -> (i32, i32, i32) {
    %c0_i32 = arith.constant 0 : i32
    %c0_i32_0 = arith.constant 0 : i32
    return %arg0, %c0_i32, %arg1 : i32, i32, i32
  }
  func.func @transform_1(%arg0: i32, %arg1: i32) -> (i32, i32) {
    %c0_i32 = arith.constant 0 : i32
    %c0_i32_0 = arith.constant 0 : i32
    %c0_i32_1 = arith.constant 0 : i32
    return %c0_i32, %c0_i32_0 : i32, i32
  }
  func.func @transform_2(%arg0: i32, %arg1: i32) -> (i32, i32) {
    %c0_i32 = arith.constant 0 : i32
    %c0_i32_0 = arith.constant 0 : i32
    %c0_i32_1 = arith.constant 0 : i32
    return %c0_i32, %c0_i32_0 : i32, i32
  }
  func.func @transform_3(%arg0: i32, %arg1: i32) -> (i32, i32, i32) {
    %c0_i32 = arith.constant 0 : i32
    %c0_i32_0 = arith.constant 0 : i32
    return %arg0, %c0_i32, %arg1 : i32, i32, i32
  }
  func.func @transform_4(%arg0: i32, %arg1: i32) -> (i32, i32, i32) {
    %c0_i32 = arith.constant 0 : i32
    %c0_i32_0 = arith.constant 0 : i32
    return %arg0, %c0_i32, %arg1 : i32, i32, i32
  }
  func.func @transform_5(%arg0: i32, %arg1: i32) -> (i32, i32, i32, i32) {
    %c0_i32 = arith.constant 0 : i32
    %c0_i32_0 = arith.constant 0 : i32
    %c0_i32_1 = arith.constant 0 : i32
    return %arg0, %arg1, %c0_i32, %c0_i32_0 : i32, i32, i32, i32
  }
}

</mosaic_0001>

<llo_original>
// kernel: fehead_forward.1
$region0: #{fehead_forward.1}
  #allocation0 [shape = 'u32[]', space=smem, size = 0x4, offset = 0x4, fixed_abs, tag = 'smem constant byte address 0x4 - core index']
  #allocation1 [shape = 'u32[144,128]{1,0:T(1,128)}', space=vmem, size = 0x12000, scoped, tag = 'internal scratch']
  %s0 = inlined_call_operand.vmem [shape: f32[2,8,256], index: 0, kind: input, shape index: {}]
  %s1 = inlined_call_operand.vmem [shape: f32[24,8], index: 1, kind: input, shape index: {}]
  %s2 = inlined_call_operand.vmem [shape: f32[24,1], index: 2, kind: input, shape index: {}]
  %s3 = inlined_call_operand.vmem [shape: f32[2,4,256], index: 3, kind: output, shape index: {0}]
  %s4 = inlined_call_operand.vmem [shape: f32[2,2,256], index: 4, kind: output, shape index: {1}]
  %s5 = inlined_call_operand.vmem [shape: f32[2,1,1,1], index: 5, kind: output, shape index: {2}]
  %6 = xla_tuple %s3, %s4, %s5
  %s7 = sld [smem:[#allocation0]]
  $region61: #{fehead_forward.1} parent=0
    _
  %s9 = ssub.s32 1, %s7
  %s10 = scalar_select 0, %s9, %s7
  loop: start=0, step=1, limit=4
  $region2: #{fehead_forward.1} parent=0 // loop_pre_header
    _
  $region3: #{fehead_forward.1} parent=0 // loop_header
    %s12 = sphi 0, %s16
    %p13 = scmp.ge.s32.totalorder %s12, 4
    %s19 = sphi 0, %s31
    %s20 = sphi 0, %s27
    %s21 = sphi 0, %s19
    %s22 = sphi 0, %s20
    %s23 = sphi 0, %s21
    %s24 = sphi 0, %s22
    %s36 = sphi 0, %s38
    %s39 = sphi 0, %s36
    %s40 = sphi 0, %s39
    %s56 = sphi 0, %s40
    %s60 = sphi 0, %s60
    %s62 = sphi 0, %s60
    %s63 = sphi 0, %s62
    %s77 = sphi 0, %s63
    %s81 = sphi 0, %s81
    %s83 = sphi 0, %s81
    %s84 = sphi 0, %s83
    %s98 = sphi 0, %s84
    %s106 = sphi 0, %s108
    %s109 = sphi 0, %s106
    %s110 = sphi 0, %s109
    %s126 = sphi 0, %s110
    %s134 = sphi 0, %s136
    %s137 = sphi 0, %s134
    %s138 = sphi 0, %s137
    %s154 = sphi 0, %s138
    %s162 = sphi 0, %s164
    %s165 = sphi 0, %s162
    %s166 = sphi 0, %s165
    %s182 = sphi 0, %s166
  $region4: #{fehead_forward.1} parent=0 // loop_header_branch
    %15 = sbr.rel (%p13) target = $region8
  $region5: #{fehead_forward.1} parent=0 // loop_body
    %s17 = ssub.s32 %s12, 1
    %s18 = ssub.s32 %s12, 2
    %s25 = sadd.s32 1, %s20
    %p26 = scmp.ge.s32.totalorder %s25, 1
    %s27 = scalar_select %p26, 0, %s25
    %s28 = sadd.s32 1, %s19
    %s29 = scalar_select %p26, %s28, %s19
    %p30 = scmp.ge.s32.totalorder %s29, 2
    %s31 = scalar_select %p30, 0, %s29
    %s32 = ssub.s32 %s19, %s31
    %s33 = ssub.s32 %s20, %s27
    %s34 = sor.u32 %s32, %s33
    %p35 = scmp.eq.s32.totalorder %s34, 0
    %s37 = sadd.s32 %s36, 1
    %s38 = scalar_select %p35, %s36, %s37
    %p41 = pneg %p35
    %p42 = scmp.eq.s32.totalorder %s12, 1
    %p43 = por %p41, %p42
    %p44 = scmp.ne.s32.totalorder %s36, %s39
    %p45 = scmp.eq.s32.totalorder %s12, 0
    %p46 = por %p44, %p45
    %p47 = scmp.ne.s32.totalorder %s36, %s39
    %p48 = scmp.eq.s32.totalorder %s17, 1
    %p49 = por %p47, %p48
    %p50 = scmp.ne.s32.totalorder %s39, %s40
    %p51 = scmp.eq.s32.totalorder %s17, 0
    %p52 = por %p50, %p51
    %p53 = scmp.ne.s32.totalorder %s39, %s40
    %p54 = scmp.eq.s32.totalorder %s18, 1
    %p55 = por %p53, %p54
    %p57 = scmp.ne.s32.totalorder %s40, %s56
    %p58 = scmp.eq.s32.totalorder %s18, 0
    %p59 = por %p57, %p58
    %s61 = sadd.s32 %s60, 1
    %p64 = scmp.eq.s32.totalorder %s12, 1
    %p65 = scmp.ne.s32.totalorder %s60, %s62
    %p66 = scmp.eq.s32.totalorder %s12, 0
    %p67 = por %p65, %p66
    %p68 = scmp.ne.s32.totalorder %s60, %s62
    %p69 = scmp.eq.s32.totalorder %s17, 1
    %p70 = por %p68, %p69
    %p71 = scmp.ne.s32.totalorder %s62, %s63
    %p72 = scmp.eq.s32.totalorder %s17, 0
    %p73 = por %p71, %p72
    %p74 = scmp.ne.s32.totalorder %s62, %s63
    %p75 = scmp.eq.s32.totalorder %s18, 1
    %p76 = por %p74, %p75
    %p78 = scmp.ne.s32.totalorder %s63, %s77
    %p79 = scmp.eq.s32.totalorder %s18, 0
    %p80 = por %p78, %p79
    %s82 = sadd.s32 %s81, 1
    %p85 = scmp.eq.s32.totalorder %s12, 1
    %p86 = scmp.ne.s32.totalorder %s81, %s83
    %p87 = scmp.eq.s32.totalorder %s12, 0
    %p88 = por %p86, %p87
    %p89 = scmp.ne.s32.totalorder %s81, %s83
    %p90 = scmp.eq.s32.totalorder %s17, 1
    %p91 = por %p89, %p90
    %p92 = scmp.ne.s32.totalorder %s83, %s84
    %p93 = scmp.eq.s32.totalorder %s17, 0
    %p94 = por %p92, %p93
    %p95 = scmp.ne.s32.totalorder %s83, %s84
    %p96 = scmp.eq.s32.totalorder %s18, 1
    %p97 = por %p95, %p96
    %p99 = scmp.ne.s32.totalorder %s84, %s98
    %p100 = scmp.eq.s32.totalorder %s18, 0
    %p101 = por %p99, %p100
    %s102 = ssub.s32 %s19, %s31
    %s103 = ssub.s32 %s20, %s27
    %s104 = sor.u32 %s102, %s103
    %p105 = scmp.eq.s32.totalorder %s104, 0
    %s107 = sadd.s32 %s106, 1
    %s108 = scalar_select %p105, %s106, %s107
    %p111 = pneg %p105
    %p112 = scmp.eq.s32.totalorder %s12, 1
    %p113 = por %p111, %p112
    %p114 = scmp.ne.s32.totalorder %s106, %s109
    %p115 = scmp.eq.s32.totalorder %s12, 0
    %p116 = por %p114, %p115
    %p117 = scmp.ne.s32.totalorder %s106, %s109
    %p118 = scmp.eq.s32.totalorder %s17, 1
    %p119 = por %p117, %p118
    %p120 = scmp.ne.s32.totalorder %s109, %s110
    %p121 = scmp.eq.s32.totalorder %s17, 0
    %p122 = por %p120, %p121
    %p123 = scmp.ne.s32.totalorder %s109, %s110
    %p124 = scmp.eq.s32.totalorder %s18, 1
    %p125 = por %p123, %p124
    %p127 = scmp.ne.s32.totalorder %s110, %s126
    %p128 = scmp.eq.s32.totalorder %s18, 0
    %p129 = por %p127, %p128
    %s130 = ssub.s32 %s19, %s31
    %s131 = ssub.s32 %s20, %s27
    %s132 = sor.u32 %s130, %s131
    %p133 = scmp.eq.s32.totalorder %s132, 0
    %s135 = sadd.s32 %s134, 1
    %s136 = scalar_select %p133, %s134, %s135
    %p139 = pneg %p133
    %p140 = scmp.eq.s32.totalorder %s12, 1
    %p141 = por %p139, %p140
    %p142 = scmp.ne.s32.totalorder %s134, %s137
    %p143 = scmp.eq.s32.totalorder %s12, 0
    %p144 = por %p142, %p143
    %p145 = scmp.ne.s32.totalorder %s134, %s137
    %p146 = scmp.eq.s32.totalorder %s17, 1
    %p147 = por %p145, %p146
    %p148 = scmp.ne.s32.totalorder %s137, %s138
    %p149 = scmp.eq.s32.totalorder %s17, 0
    %p150 = por %p148, %p149
    %p151 = scmp.ne.s32.totalorder %s137, %s138
    %p152 = scmp.eq.s32.totalorder %s18, 1
    %p153 = por %p151, %p152
    %p155 = scmp.ne.s32.totalorder %s138, %s154
    %p156 = scmp.eq.s32.totalorder %s18, 0
    %p157 = por %p155, %p156
    %s158 = ssub.s32 %s19, %s31
    %s159 = ssub.s32 %s20, %s27
    %s160 = sor.u32 %s158, %s159
    %p161 = scmp.eq.s32.totalorder %s160, 0
    %s163 = sadd.s32 %s162, 1
    %s164 = scalar_select %p161, %s162, %s163
    %p167 = pneg %p161
    %p168 = scmp.eq.s32.totalorder %s12, 1
    %p169 = por %p167, %p168
    %p170 = scmp.ne.s32.totalorder %s162, %s165
    %p171 = scmp.eq.s32.totalorder %s12, 0
    %p172 = por %p170, %p171
    %p173 = scmp.ne.s32.totalorder %s162, %s165
    %p174 = scmp.eq.s32.totalorder %s17, 1
    %p175 = por %p173, %p174
    %p176 = scmp.ne.s32.totalorder %s165, %s166
    %p177 = scmp.eq.s32.totalorder %s17, 0
    %p178 = por %p176, %p177
    %p179 = scmp.ne.s32.totalorder %s165, %s166
    %p180 = scmp.eq.s32.totalorder %s18, 1
    %p181 = por %p179, %p180
    %p183 = scmp.ne.s32.totalorder %s166, %s182
    %p184 = scmp.eq.s32.totalorder %s18, 0
    %p185 = por %p183, %p184
    %p186 = scmp.le.s32.totalorder 1, %s12
    %p187 = scmp.lt.s32.totalorder %s12, 3
    %p188 = pnand %p186, %p187
    %p189 = pneg %p188
    // Predicated region
    $region9: #{fehead_forward.1} parent=5 // pred_check
      _
    $region10: #{fehead_forward.1} parent=5 // pred_check_branch
      %191 = sbr.rel (%p188) target = $region12
    $region11: #{fehead_forward.1} parent=5 // pred_region
      %s192 = ssub.s32 %s12, 1
      // Predicated region
      $region13: #{fehead_forward.1} parent=11 // pred_check
        %p193 = pneg %p73
      $region14: #{fehead_forward.1} parent=11 // pred_check_branch
        %195 = sbr.rel (%p193) target = $region16
      $region15: #{fehead_forward.1} parent=11 // pred_region
        _
      $region16: #{fehead_forward.1} parent=11 // pred_fallthru
        _
      // Predicated region
      $region17: #{fehead_forward.1} parent=11 // pred_check
        %p196 = pneg %p94
      $region18: #{fehead_forward.1} parent=11 // pred_check_branch
        %198 = sbr.rel (%p196) target = $region20
      $region19: #{fehead_forward.1} parent=11 // pred_region
        _
      $region20: #{fehead_forward.1} parent=11 // pred_fallthru
        _
    $region12: #{fehead_forward.1} parent=5 // pred_fallthru
      _
    %p199 = scmp.lt.s32.totalorder %s12, 2
    // Predicated region
    $region21: #{fehead_forward.1} parent=5 // pred_check
      %p200 = pneg %p199
    $region22: #{fehead_forward.1} parent=5 // pred_check_branch
      %202 = sbr.rel (%p200) target = $region24
    $region23: #{fehead_forward.1} parent=5 // pred_region
      // Predicated region
      $region25: #{fehead_forward.1} parent=23 // pred_check
        %p203 = pneg %p46
      $region26: #{fehead_forward.1} parent=23 // pred_check_branch
        %205 = sbr.rel (%p203) target = $region28
      $region27: #{fehead_forward.1} parent=23 // pred_region
        %s206 = smul.u32 2, %s20
        %p207 = scmp.lt.s32.totalorder %s19, 1
        %s208 = scalar_select %p207, %s19, 1
        %p209 = scmp.lt.s32.totalorder %s206, 1
        %s210 = scalar_select %p209, %s206, 1
        %s211 = smul.addr %s208, 2
        %s212 = sadd.s32 %s210, %s211
        %s213 = smul.addr %s212, 8
        %s214 = scalar_lea.vmem %s0, %s213
        %s215 = smul.u32 2, %s20
      $region28: #{fehead_forward.1} parent=23 // pred_fallthru
        _
    $region24: #{fehead_forward.1} parent=5 // pred_fallthru
      _
    %p216 = scmp.le.s32.totalorder 1, %s12
    %p217 = scmp.lt.s32.totalorder %s12, 3
    %p218 = pnand %p216, %p217
    %p219 = pneg %p218
    // Predicated region
    $region29: #{fehead_forward.1} parent=5 // pred_check
      _
    $region30: #{fehead_forward.1} parent=5 // pred_check_branch
      %221 = sbr.rel (%p218) target = $region32
    $region31: #{fehead_forward.1} parent=5 // pred_region
      %s222 = ssub.s32 %s12, 1
      %s223 = smul.u32 2, %s22
      %p224 = scmp.lt.s32.totalorder %s21, 1
      %s225 = scalar_select %p224, %s21, 1
      %p226 = scmp.lt.s32.totalorder %s223, 1
      %s227 = scalar_select %p226, %s223, 1
      %s228 = smul.addr %s225, 2
      %s229 = sadd.s32 %s227, %s228
      %s230 = smul.addr %s229, 8
      %s231 = scalar_lea.vmem %s0, %s230
      %p232 = pneg %p52
      %p233 = pneg %p49
      %p234 = pneg %p73
      %p235 = pneg %p70
      %p236 = pneg %p94
      %p237 = pneg %p91
      %p238 = pneg %p122
      %p239 = pneg %p119
      %s240 = smul.u32 2, %s22
      %p241 = scmp.lt.s32.totalorder %s21, 1
      %s242 = scalar_select %p241, %s21, 1
      %p243 = scmp.lt.s32.totalorder %s240, 1
      %s244 = scalar_select %p243, %s240, 1
      %s245 = smul.addr %s242, 2
      %s246 = sadd.s32 %s244, %s245
      %s247 = smul.addr %s246, 4
      %s248 = scalar_lea.vmem %s3, %s247
      %p249 = pneg %p150
      %p250 = pneg %p147
      %s251 = smul.u32 2, %s22
      %p252 = scmp.lt.s32.totalorder %s21, 1
      %s253 = scalar_select %p252, %s21, 1
      %p254 = scmp.lt.s32.totalorder %s251, 1
      %s255 = scalar_select %p254, %s251, 1
      %s256 = smul.addr %s253, 2
      %s257 = sadd.s32 %s255, %s256
      %s258 = smul.addr %s257, 2
      %s259 = scalar_lea.vmem %s4, %s258
      %p260 = pneg %p178
      %p261 = pneg %p175
      %p262 = scmp.lt.s32.totalorder %s21, 1
      %s263 = scalar_select %p262, %s21, 1
      %p264 = scmp.lt.s32.totalorder %s22, 0
      %s265 = scalar_select %p264, %s22, 0
      %s266 = sadd.s32 %s265, %s263
      %s267 = scalar_lea.vmem %s5, %s266
      %s268 = smul.u32 2, %s22
      %p269 = scmp.lt.s32.totalorder %s21, 1
      %s270 = scalar_select %p269, %s21, 1
      %p271 = scmp.lt.s32.totalorder %s268, 1
      %s272 = scalar_select %p271, %s268, 1
      %s273 = smul.addr %s270, 2
      %s274 = sadd.s32 %s272, %s273
      %s275 = smul.addr %s274, 8
      %s276 = scalar_lea.vmem %s0, %s275
      %s277 = smul.u32 2, %s22
      %s278 = smul.u32 2, %s22
      %p279 = scmp.lt.s32.totalorder %s21, 1
      %s280 = scalar_select %p279, %s21, 1
      %p281 = scmp.lt.s32.totalorder %s278, 1
      %s282 = scalar_select %p281, %s278, 1
      %s283 = smul.addr %s280, 2
      %s284 = sadd.s32 %s282, %s283
      %s285 = smul.addr %s284, 4
      %s286 = scalar_lea.vmem %s3, %s285
      %s287 = smul.u32 2, %s22
      %s288 = smul.u32 2, %s22
      %p289 = scmp.lt.s32.totalorder %s21, 1
      %s290 = scalar_select %p289, %s21, 1
      %p291 = scmp.lt.s32.totalorder %s288, 1
      %s292 = scalar_select %p291, %s288, 1
      %s293 = smul.addr %s290, 2
      %s294 = sadd.s32 %s292, %s293
      %s295 = smul.addr %s294, 2
      %s296 = scalar_lea.vmem %s4, %s295
      %s297 = smul.u32 2, %s22
      %p298 = scmp.lt.s32.totalorder %s21, 1
      %s299 = scalar_select %p298, %s21, 1
      %p300 = scmp.lt.s32.totalorder %s22, 0
      %s301 = scalar_select %p300, %s22, 0
      %s302 = sadd.s32 %s301, %s299
      %s303 = scalar_lea.vmem %s5, %s302
      %v304 = vld [vmem:[%s276] sm:$0xff]
      %v305 = vld [vmem:[%s276 + $0x8] sm:$0xff]
      %v306 = vld [vmem:[%s1] sm:$0xff]
      %v307 = vld [vmem:[%s1 + $0x8] sm:$0xff]
      %v308 = vld [vmem:[%s1 + $0x10] sm:$0xff]
      %v309 = vld [vmem:[%s2] sm:$0xff]
      %v310 = vld [vmem:[%s2 + $0x8] sm:$0xff]
      %v311 = vld [vmem:[%s2 + $0x10] sm:$0xff]
      %313 = vset.pattern.permute.xlu0 0
      %314 = vperm.xlu0 %313, %v309
      %v315 = vpop.permute.xlu0 %314
      %318 = vset.pattern.permute.xlu0 0
      %319 = vperm.xlu0 %318, %v310
      %v320 = vpop.permute.xlu0 %319
      %323 = vset.pattern.permute.xlu0 0
      %324 = vperm.xlu0 %323, %v311
      %v325 = vpop.permute.xlu0 %324
      %vm327 = vcmask 64512
      %v329 = vsel %vm327, %v306, 0
      %v332 = vsel %vm327, %v307, 0
      %v335 = vsel %vm327, %v308, 0
      %337 = vmatprep.subr.mxu0 %v305
      %338 = vmatpush1.msra.mxu0 %v304
      %339 = vmatprep.subr.mxu0 0.0
      %340 = vmatpush1.msra.mxu0 0.0
      %341 = vmatprep.subr.mxu0 0.0
      %342 = vmatpush1.msra.mxu0 0.0
      %343 = vmatprep.subr.mxu0 0.0
      %344 = vmatpush1.msra.mxu0 0.0
      %345 = vmatprep.subr.mxu0 0.0
      %346 = vmatpush1.msra.mxu0 0.0
      %347 = vmatprep.subr.mxu0 0.0
      %348 = vmatpush1.msra.mxu0 0.0
      %349 = vmatprep.subr.mxu0 0.0
      %350 = vmatpush1.msra.mxu0 0.0
      %351 = vmatprep.subr.mxu0 0.0
      %352 = vmatpush1.msra.mxu0 0.0
      %353 = vmatprep.subr.mxu0 0.0
      %354 = vmatpush1.msra.mxu0 0.0
      %355 = vmatprep.subr.mxu0 0.0
      %356 = vmatpush1.msra.mxu0 0.0
      %357 = vmatprep.subr.mxu0 0.0
      %358 = vmatpush1.msra.mxu0 0.0
      %359 = vmatprep.subr.mxu0 0.0
      %360 = vmatpush1.msra.mxu0 0.0
      %361 = vmatprep.subr.mxu0 0.0
      %362 = vmatpush1.msra.mxu0 0.0
      %363 = vmatprep.subr.mxu0 0.0
      %364 = vmatpush1.msra.mxu0 0.0
      %365 = vmatprep.subr.mxu0 0.0
      %366 = vmatpush1.msra.mxu0 0.0
      %367 = vmatprep.subr.mxu0 0.0
      %368 = vmatpush1.msra.mxu0 0.0
      %369 = vmatprep.subr.mxu0 0.0
      %370 = vmatpush1.msra.mxu0 0.0
      %371 = vmatprep.subr.mxu0 0.0
      %372 = vmatpush1.msra.mxu0 0.0
      %373 = vmatprep.subr.mxu0 0.0
      %374 = vmatpush1.msra.mxu0 0.0
      %375 = vmatprep.subr.mxu0 0.0
      %376 = vmatpush1.msra.mxu0 0.0
      %377 = vmatprep.subr.mxu0 0.0
      %378 = vmatpush1.msra.mxu0 0.0
      %379 = vmatprep.subr.mxu0 0.0
      %380 = vmatpush1.msra.mxu0 0.0
      %381 = vmatprep.subr.mxu0 0.0
      %382 = vmatpush1.msra.mxu0 0.0
      %383 = vmatprep.subr.mxu0 0.0
      %384 = vmatpush1.msra.mxu0 0.0
      %385 = vmatprep.subr.mxu0 0.0
      %386 = vmatpush1.msra.mxu0 0.0
      %387 = vmatprep.subr.mxu0 0.0
      %388 = vmatpush1.msra.mxu0 0.0
      %389 = vmatprep.subr.mxu0 0.0
      %390 = vmatpush1.msra.mxu0 0.0
      %391 = vmatprep.subr.mxu0 0.0
      %392 = vmatpush1.msra.mxu0 0.0
      %393 = vmatprep.subr.mxu0 0.0
      %394 = vmatpush1.msra.mxu0 0.0
      %395 = vmatprep.subr.mxu0 0.0
      %396 = vmatpush1.msra.mxu0 0.0
      %397 = vmatprep.subr.mxu0 0.0
      %398 = vmatpush1.msra.mxu0 0.0
      %399 = vmatprep.subr.mxu0 0.0
      %400 = vmatpush1.msra.mxu0 0.0
      %401 = vmatprep.mubr.f32.mxu0 0.0
      %402 = vmatmul.mubr.f32.gmra.mrb[0].mxu0 %v329
      %v403 = vpop.f32.mrb[0].mxu0
      %v404 = vadd.f32 %v315, %v403
      %v405 = vpop.f32.mrb[0].mxu0
      %v406 = vadd.f32 %v315, %v405
      %407 = vmatprep.mubr.f32.mxu0 0.0
      %408 = vmatmul.mubr.f32.gmra.mrb[0].mxu0 %v332
      %v409 = vpop.f32.mrb[0].mxu0
      %v410 = vadd.f32 %v320, %v409
      %v411 = vpop.f32.mrb[0].mxu0
      %v412 = vadd.f32 %v320, %v411
      %413 = vmatprep.mubr.f32.mxu0 0.0
      %414 = vmatmul.mubr.f32.gmra.mrb[0].mxu0 %v335
      %v415 = vpop.f32.mrb[0].mxu0
      %v416 = vadd.f32 %v325, %v415
      %v417 = vpop.f32.mrb[0].mxu0
      %v418 = vadd.f32 %v325, %v417
      %419 = vdwg.mxu0
      %v422 = vcombine.low %v404, %v406
      %424 = vst [vmem:[%s286] sm:$0xff] %v422
      %v427 = vcombine.low %v410, %v412
      %v429 = vunpack.c.l.s4 1983009808
      %v430 = vunpack.c.0.s8 %v429
      %v431 = vlaneseq
      %v432 = vshrl.u32 %v431, 7
      %v433 = vsub.s32 %v430, %v432
      %v434 = vrot.slane %v427, %v433
      %436 = vst [vmem:[%s296] sm:$0xf] %v434
      %vm437 = vcmask 1040384
      %v438 = vsel %vm437, %v416, 0.0
      %v439 = vsel %vm437, %v418, 0.0
      %v440 = vadd.f32 %v438, %v439
      %441 = vadd.xlane.f32.xlu0 %v440
      %v442 = vpop.xlane.xlu0 %441
      %vm443 = vcmask 0
      %444 = vst.msk [vmem:[%s303] sm:$0x1] %vm443, %v442
      %s445 = smul.u32 2, %s22
      %p446 = scmp.lt.s32.totalorder %s21, 1
      %s447 = scalar_select %p446, %s21, 1
      %p448 = scmp.lt.s32.totalorder %s445, 1
      %s449 = scalar_select %p448, %s445, 1
      %s450 = smul.addr %s447, 2
      %s451 = sadd.s32 %s449, %s450
      %s452 = smul.addr %s451, 4
      %s453 = scalar_lea.vmem %s3, %s452
      %s454 = smul.u32 2, %s22
      %p455 = scmp.lt.s32.totalorder %s21, 1
      %s456 = scalar_select %p455, %s21, 1
      %p457 = scmp.lt.s32.totalorder %s454, 1
      %s458 = scalar_select %p457, %s454, 1
      %s459 = smul.addr %s456, 2
      %s460 = sadd.s32 %s458, %s459
      %s461 = smul.addr %s460, 2
      %s462 = scalar_lea.vmem %s4, %s461
      %p463 = scmp.lt.s32.totalorder %s21, 1
      %s464 = scalar_select %p463, %s21, 1
      %p465 = scmp.lt.s32.totalorder %s22, 0
      %s466 = scalar_select %p465, %s22, 0
      %s467 = sadd.s32 %s466, %s464
      %s468 = scalar_lea.vmem %s5, %s467
      // Predicated region
      $region33: #{fehead_forward.1} parent=31 // pred_check
        %p469 = pneg %p119
      $region34: #{fehead_forward.1} parent=31 // pred_check_branch
        %471 = sbr.rel (%p469) target = $region36
      $region35: #{fehead_forward.1} parent=31 // pred_region
        %s472 = smul.u32 2, %s22
      $region36: #{fehead_forward.1} parent=31 // pred_fallthru
        _
      // Predicated region
      $region37: #{fehead_forward.1} parent=31 // pred_check
        %p473 = pneg %p147
      $region38: #{fehead_forward.1} parent=31 // pred_check_branch
        %475 = sbr.rel (%p473) target = $region40
      $region39: #{fehead_forward.1} parent=31 // pred_region
        %s476 = smul.u32 2, %s22
      $region40: #{fehead_forward.1} parent=31 // pred_fallthru
        _
      // Predicated region
      $region41: #{fehead_forward.1} parent=31 // pred_check
        %p477 = pneg %p175
      $region42: #{fehead_forward.1} parent=31 // pred_check_branch
        %479 = sbr.rel (%p477) target = $region44
      $region43: #{fehead_forward.1} parent=31 // pred_region
        _
      $region44: #{fehead_forward.1} parent=31 // pred_fallthru
        _
    $region32: #{fehead_forward.1} parent=5 // pred_fallthru
      _
    %p480 = scmp.le.s32.totalorder 2, %s12
    // Predicated region
    $region45: #{fehead_forward.1} parent=5 // pred_check
      %p481 = pneg %p480
    $region46: #{fehead_forward.1} parent=5 // pred_check_branch
      %483 = sbr.rel (%p481) target = $region48
    $region47: #{fehead_forward.1} parent=5 // pred_region
      %s484 = ssub.s32 %s12, 2
      // Predicated region
      $region49: #{fehead_forward.1} parent=47 // pred_check
        %p485 = pneg %p125
      $region50: #{fehead_forward.1} parent=47 // pred_check_branch
        %487 = sbr.rel (%p485) target = $region52
      $region51: #{fehead_forward.1} parent=47 // pred_region
        %s488 = smul.u32 2, %s24
        %p489 = scmp.lt.s32.totalorder %s23, 1
        %s490 = scalar_select %p489, %s23, 1
        %p491 = scmp.lt.s32.totalorder %s488, 1
        %s492 = scalar_select %p491, %s488, 1
        %s493 = smul.addr %s490, 2
        %s494 = sadd.s32 %s492, %s493
        %s495 = smul.addr %s494, 4
        %s496 = scalar_lea.vmem %s3, %s495
      $region52: #{fehead_forward.1} parent=47 // pred_fallthru
        _
      // Predicated region
      $region53: #{fehead_forward.1} parent=47 // pred_check
        %p497 = pneg %p153
      $region54: #{fehead_forward.1} parent=47 // pred_check_branch
        %499 = sbr.rel (%p497) target = $region56
      $region55: #{fehead_forward.1} parent=47 // pred_region
        %s500 = smul.u32 2, %s24
        %p501 = scmp.lt.s32.totalorder %s23, 1
        %s502 = scalar_select %p501, %s23, 1
        %p503 = scmp.lt.s32.totalorder %s500, 1
        %s504 = scalar_select %p503, %s500, 1
        %s505 = smul.addr %s502, 2
        %s506 = sadd.s32 %s504, %s505
        %s507 = smul.addr %s506, 2
        %s508 = scalar_lea.vmem %s4, %s507
      $region56: #{fehead_forward.1} parent=47 // pred_fallthru
        _
      // Predicated region
      $region57: #{fehead_forward.1} parent=47 // pred_check
        %p509 = pneg %p181
      $region58: #{fehead_forward.1} parent=47 // pred_check_branch
        %511 = sbr.rel (%p509) target = $region60
      $region59: #{fehead_forward.1} parent=47 // pred_region
        %p512 = scmp.lt.s32.totalorder %s23, 1
        %s513 = scalar_select %p512, %s23, 1
        %p514 = scmp.lt.s32.totalorder %s24, 0
        %s515 = scalar_select %p514, %s24, 0
        %s516 = sadd.s32 %s515, %s513
        %s517 = scalar_lea.vmem %s5, %s516
      $region60: #{fehead_forward.1} parent=47 // pred_fallthru
        _
    $region48: #{fehead_forward.1} parent=5 // pred_fallthru
      _
  $region6: #{fehead_forward.1} parent=0 // loop_footer
    %s16 = sadd.s32 1, %s12
  $region7: #{fehead_forward.1} parent=0 // loop_footer_branch
    %11 = sbr.rel target = $region3
  $region8: #{fehead_forward.1} parent=0 // loop_exit
    _

</llo_original>
